<compile_context>
chip_gen: v7x
topology: tpu7x:2x2x1
jax: 0.10.0
libtpu: 0.0.40
codegen_flags: <defaults>
</compile_context>

<pallas_src>
import functools
import math

import jax
import jax.numpy as jnp
from jax.experimental import pallas as pl
from jax.experimental.pallas import tpu as pltpu

_LOG_SQRT_628 = math.log(math.sqrt(6.28))
_SQRT_HALF = math.sqrt(0.5)


def _weighted_l2_sigma_kernel(cw_ref, e_ref, x_ref, t_ref, sig_ref, w_ref, o_ref, *, g):
    x = x_ref[...]                                    # [TR, L]
    t = t_ref[...]                                    # [TR, L]
    # target = where(isnan(target), input, target)
    t = jnp.where(jnp.isnan(t), x, t)
    # code_weights already carry the sqrt(0.5) factor, so the reference's 0.5*
    # is folded into the squared term (one fewer VALU op per vreg).
    diff = (x - t) * cw_ref[...]                      # broadcast from [1, L]
    sig = sig_ref[...]
    # exp(-sigma) * diff instead of diff / exp(sigma): single EUP op, no divide.
    scaled = diff * jnp.exp(-sig)
    loss = scaled * scaled + _LOG_SQRT_628 + sig
    if g == 1:
        # C is a multiple of 128: the per-row weight just broadcasts across lanes.
        w_full = w_ref[...]                           # [TR, 1] -> [TR, L]
    else:
        # Expand [TR, G] per-row weights to lane-dense [TR, L] with a constant 0/1
        # matmul on the otherwise-idle MXU.  HIGHEST precision keeps the weights
        # exact (default MXU precision would round them to ~bf16).
        w_full = jnp.dot(
            w_ref[...], e_ref[...],
            preferred_element_type=jnp.float32,
            precision=jax.lax.Precision.HIGHEST,
        )
    o_ref[...] = loss * w_full


def _vmem_capacity_bytes():
    try:
        return int(pltpu.get_tpu_info().vmem_capacity_bytes)
    except Exception:
        return 64 * 1024 * 1024  # conservative fallback: v7x-sized VMEM


def weighted_l2_with_sigma_loss(inp, target, weights, sigma, code_weights):
    """inp/target/sigma: [B, N, C] f32; weights: [B, N] f32 or None;
    code_weights: [C] f32 or None."""
    # TODO(synk): the sigma=None branch of the PyTorch module (plain 0.5*diff**2) is
    # not implemented by this kernel; it covers the sigma-weighted forward path.
    B, N, C = inp.shape
    M = B * N

    if code_weights is None:
        code_weights = jnp.ones((C,), jnp.float32)
    if weights is None:
        weights = jnp.ones((B, N), jnp.float32)

    # Lane-dense packing: L lanes per packed row (multiple of 128), G rows per packed row.
    L = C * 128 // math.gcd(C, 128)
    G = L // C
    MR = -(-M // G)                                   # packed rows (ceil)
    M_need = MR * G                                   # rows after packing pad (multiple of G)

    # ---- Row-tile sizing: generation-aware, large tiles, grid kept >= ~4 steps ----
    vmem_cap = _vmem_capacity_bytes()
    if vmem_cap >= 96 * 1024 * 1024:                  # v5e / v6e: 128 MiB physical VMEM
        stream_tile_bytes = 4 * 1024 * 1024
        vmem_limit = 64 * 1024 * 1024
    else:                                             # v7x: 64 MiB physical VMEM
        stream_tile_bytes = 2 * 1024 * 1024
        vmem_limit = 40 * 1024 * 1024

    if MR <= 8:
        TR = MR                                       # single block = full (tiny) array
    else:
        TR = max(8, (stream_tile_bytes // (L * 4)) // 8 * 8)
        # Keep >= ~4 grid steps so the "parallel" axis feeds both v7x TensorCores.
        q = -(-MR // 4)
        TR = min(TR, max(8, -(-q // 8) * 8))

    # ---- Pack inputs: zero-copy reshape when M is already a multiple of G ----
    if M_need == M:
        x_p = inp.reshape(MR, L)                      # free, row-major reshape
        t_p = target.reshape(MR, L)
        s_p = sigma.reshape(MR, L)
        w_p = weights.reshape(MR, G)
    else:
        pad = M_need - M
        x_p = jnp.pad(inp.reshape(M, C), ((0, pad), (0, 0))).reshape(MR, L)
        t_p = jnp.pad(target.reshape(M, C), ((0, pad), (0, 0))).reshape(MR, L)
        s_p = jnp.pad(sigma.reshape(M, C), ((0, pad), (0, 0))).reshape(MR, L)
        w_p = jnp.pad(weights.reshape(M), (0, pad)).reshape(MR, G)

    # code_weights tiled to the packed lane layout (lane j uses code_weights[j % C]),
    # with the 0.5 loss factor folded in as sqrt(0.5).
    cw_tiled = (jnp.tile(code_weights.astype(jnp.float32), G) * _SQRT_HALF).reshape(1, L)
    # Expansion matrix: E[g, j] = 1 iff lane j belongs to packed sub-row g (j // C == g).
    expand = (jnp.arange(L) // C == jnp.arange(G)[:, None]).astype(jnp.float32)

    grid = (pl.cdiv(MR, TR),)                         # ragged last block: Pallas masks OOB writes

    out = pl.pallas_call(
        functools.partial(_weighted_l2_sigma_kernel, g=G),
        out_shape=jax.ShapeDtypeStruct((MR, L), jnp.float32),
        grid_spec=pltpu.PrefetchScalarGridSpec(
            num_scalar_prefetch=0,
            grid=grid,
            in_specs=[
                pl.BlockSpec((1, L), lambda i: (0, 0)),    # code_weights (resident)
                pl.BlockSpec((G, L), lambda i: (0, 0)),    # weight expansion matrix (resident)
                pl.BlockSpec((TR, L), lambda i: (i, 0)),   # input
                pl.BlockSpec((TR, L), lambda i: (i, 0)),   # target
                pl.BlockSpec((TR, L), lambda i: (i, 0)),   # sigma
                pl.BlockSpec((TR, G), lambda i: (i, 0)),   # per-row weights (narrow)
            ],
            out_specs=pl.BlockSpec((TR, L), lambda i: (i, 0)),
        ),
        compiler_params=pltpu.CompilerParams(
            dimension_semantics=("parallel",),             # shards across v7x's 2 TCs
            vmem_limit_bytes=vmem_limit,
        ),
    )(cw_tiled, expand, x_p, t_p, s_p, w_p)

    if M_need == M:
        return out.reshape(B, N, C)                   # free reshape, no slice copy
    return out.reshape(M_need, C)[:M].reshape(B, N, C)


def _reference(inp, target, weights, sigma, code_weights):
    # Pure-JAX reference mirroring the PyTorch forward exactly.
    target = jnp.where(jnp.isnan(target), inp, target)
    diff = (inp - target) * code_weights
    loss = 0.5 * (diff / jnp.exp(sigma)) ** 2 + _LOG_SQRT_628 + sigma
    return loss * weights[..., None]


if __name__ == "__main__":
    B, N, C = 2, 16, 8
    key = jax.random.PRNGKey(0)
    k1, k2, k3, k4 = jax.random.split(key, 4)

    inp = jax.random.normal(k1, (B, N, C), dtype=jnp.float32)
    target = jax.random.normal(k2, (B, N, C), dtype=jnp.float32)
    # Inject a few NaNs into target to exercise the isnan path.
    target = target.at[0, 3, 2].set(jnp.nan)
    target = target.at[1, 7, 5].set(jnp.nan)
    sigma = 0.1 * jax.random.normal(k3, (B, N, C), dtype=jnp.float32)
    weights = jax.random.uniform(k4, (B, N), dtype=jnp.float32)
    # Deterministic code_weights (module __init__ takes a list of length C).
    code_weights = jnp.linspace(0.5, 1.5, C, dtype=jnp.float32)

    out = weighted_l2_with_sigma_loss(inp, target, weights, sigma, code_weights)
    out = jax.block_until_ready(out)

    ref = _reference(inp, target, weights, sigma, code_weights)
    assert out.shape == (B, N, C) and out.dtype == jnp.float32
    assert jnp.allclose(out, ref, atol=1e-5, rtol=1e-5), "mismatch vs reference"

    print("KERNEL_OK")
</pallas_src>

<mosaic_0001>
module attributes {stable_mosaic.version = 11 : i64} {
  func.func @_weighted_l2_sigma_kernel(%arg0: i32, %arg1: memref<1x128xf32, #tpu.memory_space<vmem>>, %arg2: memref<16x128xf32, #tpu.memory_space<vmem>>, %arg3: memref<2x128xf32, #tpu.memory_space<vmem>>, %arg4: memref<2x128xf32, #tpu.memory_space<vmem>>, %arg5: memref<2x128xf32, #tpu.memory_space<vmem>>, %arg6: memref<2x16xf32, #tpu.memory_space<vmem>>, %arg7: memref<2x128xf32, #tpu.memory_space<vmem>>) attributes {dimension_semantics = [#tpu.dimension_semantics<parallel>], iteration_bounds = array<i64: 1>, scalar_prefetch = 0 : i64, scratch_operands = 0 : i64, tpu.core_type = #tpu.core_type<tc>, window_params = [{pipeline_mode = #tpu.pipeline_mode<synchronous>, transform_indices = @transform_0, window_bounds = array<i64: 1, 128>}, {pipeline_mode = #tpu.pipeline_mode<synchronous>, transform_indices = @transform_1, window_bounds = array<i64: 16, 128>}, {transform_indices = @transform_2, window_bounds = array<i64: 2, 128>}, {transform_indices = @transform_3, window_bounds = array<i64: 2, 128>}, {transform_indices = @transform_4, window_bounds = array<i64: 2, 128>}, {transform_indices = @transform_5, window_bounds = array<i64: 2, 16>}, {transform_indices = @transform_6, window_bounds = array<i64: 2, 128>}]} {
    %c0 = arith.constant 0 : index
    %c0_0 = arith.constant 0 : index
    %0 = vector.load %arg3[%c0, %c0_0] : memref<2x128xf32, #tpu.memory_space<vmem>>, vector<2x128xf32>
    %c0_1 = arith.constant 0 : index
    %c0_2 = arith.constant 0 : index
    %1 = vector.load %arg4[%c0_1, %c0_2] : memref<2x128xf32, #tpu.memory_space<vmem>>, vector<2x128xf32>
    %2 = arith.cmpf one, %1, %1 : vector<2x128xf32>
    %3 = arith.select %2, %0, %1 : vector<2x128xi1>, vector<2x128xf32>
    %4 = arith.subf %0, %3 : vector<2x128xf32>
    %c0_3 = arith.constant 0 : index
    %c0_4 = arith.constant 0 : index
    %5 = vector.load %arg1[%c0_3, %c0_4] : memref<1x128xf32, #tpu.memory_space<vmem>>, vector<1x128xf32>
    %6 = vector.broadcast %5 : vector<1x128xf32> to vector<2x128xf32>
    %7 = arith.mulf %4, %6 : vector<2x128xf32>
    %c0_5 = arith.constant 0 : index
    %c0_6 = arith.constant 0 : index
    %8 = vector.load %arg5[%c0_5, %c0_6] : memref<2x128xf32, #tpu.memory_space<vmem>>, vector<2x128xf32>
    %cst = arith.constant 0.000000e+00 : f32
    %9 = vector.broadcast %cst : f32 to vector<2x128xf32>
    %10 = arith.subf %9, %8 : vector<2x128xf32>
    %11 = math.exp %10 : vector<2x128xf32>
    %12 = arith.mulf %7, %11 : vector<2x128xf32>
    %13 = arith.mulf %12, %12 : vector<2x128xf32>
    %cst_7 = arith.constant 9.186850e-01 : f32
    %14 = vector.broadcast %cst_7 : f32 to vector<2x128xf32>
    %15 = arith.addf %13, %14 : vector<2x128xf32>
    %16 = arith.addf %15, %8 : vector<2x128xf32>
    %c0_8 = arith.constant 0 : index
    %c0_9 = arith.constant 0 : index
    %17 = vector.load %arg6[%c0_8, %c0_9] : memref<2x16xf32, #tpu.memory_space<vmem>>, vector<2x16xf32>
    %c0_10 = arith.constant 0 : index
    %c0_11 = arith.constant 0 : index
    %18 = vector.load %arg2[%c0_10, %c0_11] : memref<16x128xf32, #tpu.memory_space<vmem>>, vector<16x128xf32>
    %cst_12 = arith.constant dense<0.000000e+00> : vector<2x128xf32>
    %19 = tpu.matmul %17, %18, %cst_12 {dimension_numbers = #tpu.dot_dimension_numbers<[1], [0], [0], [1], [0, 0, 1, 1], [], []>, precision = #tpu.contract_precision<fp32>} : vector<2x16xf32>, vector<16x128xf32>, vector<2x128xf32> -> vector<2x128xf32>
    %20 = arith.mulf %16, %19 : vector<2x128xf32>
    %c0_13 = arith.constant 0 : index
    %c0_14 = arith.constant 0 : index
    %21 = vector.load %arg7[%c0_13, %c0_14] : memref<2x128xf32, #tpu.memory_space<vmem>>, vector<2x128xf32>
    tpu.vector_store %arg7[%c0_13, %c0_14], %20 {strides = array<i32>} : memref<2x128xf32, #tpu.memory_space<vmem>>, vector<2x128xf32>,
    return
  }
  func.func @transform_0(%arg0: i32) -> (i32, i32) {
    %c0_i32 = arith.constant 0 : i32
    %c0_i32_0 = arith.constant 0 : i32
    %c0_i32_1 = arith.constant 0 : i32
    return %c0_i32, %c0_i32_0 : i32, i32
  }
  func.func @transform_1(%arg0: i32) -> (i32, i32) {
    %c0_i32 = arith.constant 0 : i32
    %c0_i32_0 = arith.constant 0 : i32
    %c0_i32_1 = arith.constant 0 : i32
    return %c0_i32, %c0_i32_0 : i32, i32
  }
  func.func @transform_2(%arg0: i32) -> (i32, i32) {
    %c0_i32 = arith.constant 0 : i32
    %c0_i32_0 = arith.constant 0 : i32
    return %arg0, %c0_i32 : i32, i32
  }
  func.func @transform_3(%arg0: i32) -> (i32, i32) {
    %c0_i32 = arith.constant 0 : i32
    %c0_i32_0 = arith.constant 0 : i32
    return %arg0, %c0_i32 : i32, i32
  }
  func.func @transform_4(%arg0: i32) -> (i32, i32) {
    %c0_i32 = arith.constant 0 : i32
    %c0_i32_0 = arith.constant 0 : i32
    return %arg0, %c0_i32 : i32, i32
  }
  func.func @transform_5(%arg0: i32) -> (i32, i32) {
    %c0_i32 = arith.constant 0 : i32
    %c0_i32_0 = arith.constant 0 : i32
    return %arg0, %c0_i32 : i32, i32
  }
  func.func @transform_6(%arg0: i32) -> (i32, i32) {
    %c0_i32 = arith.constant 0 : i32
    %c0_i32_0 = arith.constant 0 : i32
    return %arg0, %c0_i32 : i32, i32
  }
}

</mosaic_0001>

<llo_original>
// kernel: tpu_custom_call.1
$region0: #{tpu_custom_call.1}
  #allocation0 [shape = 'u32[]', space=smem, size = 0x4, offset = 0x4, fixed_abs, tag = 'smem constant byte address 0x4 - core index']
  #allocation1 [shape = 'u32[144,128]{1,0:T(1,128)}', space=vmem, size = 0x12000, scoped, tag = 'internal scratch']
  %s0 = inlined_call_operand.hbm [shape: f32[1,128], index: 0, kind: input, shape index: {}]
  %s1 = inlined_call_operand.hbm [shape: f32[16,128], index: 1, kind: input, shape index: {}]
  %s2 = inlined_call_operand.vmem [shape: f32[2,128], index: 2, kind: input, shape index: {}]
  %s3 = inlined_call_operand.vmem [shape: f32[2,128], index: 3, kind: input, shape index: {}]
  %s4 = inlined_call_operand.vmem [shape: f32[2,128], index: 4, kind: input, shape index: {}]
  %s5 = inlined_call_operand.vmem [shape: f32[2,16], index: 5, kind: input, shape index: {}]
  %s6 = inlined_call_operand.hbm [shape: f32[2,128], index: 6, kind: output, shape index: {}]
  %s7 = sld [smem:[#allocation0]]
  $region42: #{tpu_custom_call.1} parent=0
    _
  %s9 = ssub.s32 1, %s7
  %s10 = scalar_select 0, %s9, %s7
  $region1: #{tpu_custom_call.1} parent=0
    #allocation2 [shape = 'u8[512]{0}', space=vmem, size = 0x400, scoped, tag = 'input window, operand 0, single buffered']
    #allocation3 [shape = 's32[1]{0}', space=sflag, size = 0x4, scoped, tag = 'scoped memory for tpu_custom_call.1']
    #allocation4 [shape = 's32[1]{0}', space=sflag, size = 0x4, scoped, tag = 'scoped memory for tpu_custom_call.1']
    #allocation5 [shape = 'u8[8192]{0}', space=vmem, size = 0x2000, scoped, tag = 'input window, operand 1, single buffered']
    #allocation6 [shape = 's32[1]{0}', space=sflag, size = 0x4, scoped, tag = 'scoped memory for tpu_custom_call.1']
    #allocation7 [shape = 'u8[1024]{0}', space=vmem, size = 0x400, scoped, tag = 'output window, operand 0, single buffered']
    %11 = vsyncpa [#allocation3], 0
    %12 = vsyncpa [#allocation6], 0
    %13 = vsyncpa [#allocation4], 0
    // Predicated region
    $region2: #{tpu_custom_call.1} parent=1 // pred_check
      _
    $region3: #{tpu_custom_call.1} parent=1 // pred_check_branch
      %15 = sbr.rel (0) target = $region5
    $region4: #{tpu_custom_call.1} parent=1 // pred_region
      %s17 = ssub.s32 16, 16
      %18 = vsyncadd [#allocation3], %s17
      %s20 = sshll.u32 [#allocation2], 4
      %s21 = int_to_ptr.vmem [resolvable:$true] %s20
      %23 = dma.hbm_to_vmem [thread:$0]  %s0, 16, %s21, [#allocation3]
    $region5: #{tpu_custom_call.1} parent=1 // pred_fallthru
      _
    // Predicated region
    $region6: #{tpu_custom_call.1} parent=1 // pred_check
      _
    $region7: #{tpu_custom_call.1} parent=1 // pred_check_branch
      %25 = sbr.rel (0) target = $region9
    $region8: #{tpu_custom_call.1} parent=1 // pred_region
      %s27 = ssub.s32 256, 256
      %28 = vsyncadd [#allocation6], %s27
      %s29 = sshll.u32 [#allocation5], 4
      %s30 = int_to_ptr.vmem [resolvable:$true] %s29
      %35 = dma.hbm_to_vmem [thread:$0]  %s1, 256, %s30, [#allocation6], 128, 128, 8
    $region9: #{tpu_custom_call.1} parent=1 // pred_fallthru
      _
    // Predicated region
    $region10: #{tpu_custom_call.1} parent=1 // pred_check
      _
    $region11: #{tpu_custom_call.1} parent=1 // pred_check_branch
      %37 = sbr.rel (0) target = $region13
    $region12: #{tpu_custom_call.1} parent=1 // pred_region
      _
    $region13: #{tpu_custom_call.1} parent=1 // pred_fallthru
      _
    // Predicated region
    $region14: #{tpu_custom_call.1} parent=1 // pred_check
      _
    $region15: #{tpu_custom_call.1} parent=1 // pred_check_branch
      %39 = sbr.rel (0) target = $region17
    $region16: #{tpu_custom_call.1} parent=1 // pred_region
      _
    $region17: #{tpu_custom_call.1} parent=1 // pred_fallthru
      _
    // Predicated region
    $region18: #{tpu_custom_call.1} parent=1 // pred_check
      _
    $region19: #{tpu_custom_call.1} parent=1 // pred_check_branch
      %41 = sbr.rel (0) target = $region21
    $region20: #{tpu_custom_call.1} parent=1 // pred_region
      _
    $region21: #{tpu_custom_call.1} parent=1 // pred_fallthru
      _
    // Predicated region
    $region22: #{tpu_custom_call.1} parent=1 // pred_check
      _
    $region23: #{tpu_custom_call.1} parent=1 // pred_check_branch
      %43 = sbr.rel (0) target = $region25
    $region24: #{tpu_custom_call.1} parent=1 // pred_region
      _
    $region25: #{tpu_custom_call.1} parent=1 // pred_fallthru
      _
    // Predicated region
    $region26: #{tpu_custom_call.1} parent=1 // pred_check
      _
    $region27: #{tpu_custom_call.1} parent=1 // pred_check_branch
      %45 = sbr.rel (0) target = $region29
    $region28: #{tpu_custom_call.1} parent=1 // pred_region
      %46 = dma.done [#allocation3], 16
    $region29: #{tpu_custom_call.1} parent=1 // pred_fallthru
      _
    // Predicated region
    $region30: #{tpu_custom_call.1} parent=1 // pred_check
      _
    $region31: #{tpu_custom_call.1} parent=1 // pred_check_branch
      %48 = sbr.rel (0) target = $region33
    $region32: #{tpu_custom_call.1} parent=1 // pred_region
      %49 = dma.done [#allocation6], 256
    $region33: #{tpu_custom_call.1} parent=1 // pred_fallthru
      _
    %v50 = vld [vmem:[%s2] sm:$0x3]
    %v51 = vld [vmem:[%s3] sm:$0x3]
    %vm52 = vcmp.ne.f32.partialorder %v51, %v51
    %v53 = vsel %vm52, %v50, %v51
    %v54 = vsub.f32 %v50, %v53
    %v55 = vld [vmem:[#allocation2] sm:$0x1]
    %v57 = vlaneseq
    %v58 = vshrl.u32 %v57, 7
    %v59 = vsub.s32 0, %v58
    %v60 = vrot.slane %v55, %v59
    %v62 = vmul.f32 %v54, %v60
    %v63 = vld [vmem:[%s4] sm:$0x3]
    %v64 = vsub.f32 0.0, %v63
    %v65 = vmul.f32 %v64, 1.442695
    %v66 = vpow.pop %v65
    %v67 = vmul.f32 %v62, %v66
    %v68 = vmul.f32 %v67, %v67
    %v69 = vadd.f32 %v68, 0.918685
    %v70 = vadd.f32 %v69, %v63
    %v71 = vld [vmem:[%s5] sm:$0x3]
    %v72 = vld [vmem:[#allocation5] sm:$0xff]
    %v73 = vld [vmem:[#allocation5 + $0x8] sm:$0xff]
    %vm74 = vcmask 130048
    %v76 = vsel %vm74, %v71, 0
    %78 = vmatprep.subr.mxu0 0.0
    %v79 = vand.u32 %v72, 4294901760
    %80 = vmatpush1.msra.mxu0 %v79
    %81 = vmatprep.subr.mxu0 0.0
    %v82 = vand.u32 %v73, 4294901760
    %83 = vmatpush1.msra.mxu0 %v82
    %84 = vmatprep.subr.mxu0 0.0
    %85 = vmatpush1.msra.mxu0 0.0
    %86 = vmatprep.subr.mxu0 0.0
    %87 = vmatpush1.msra.mxu0 0.0
    %88 = vmatprep.subr.mxu0 0.0
    %89 = vmatpush1.msra.mxu0 0.0
    %90 = vmatprep.subr.mxu0 0.0
    %91 = vmatpush1.msra.mxu0 0.0
    %92 = vmatprep.subr.mxu0 0.0
    %93 = vmatpush1.msra.mxu0 0.0
    %94 = vmatprep.subr.mxu0 0.0
    %95 = vmatpush1.msra.mxu0 0.0
    %96 = vmatprep.subr.mxu0 0.0
    %97 = vmatpush1.msra.mxu0 0.0
    %98 = vmatprep.subr.mxu0 0.0
    %99 = vmatpush1.msra.mxu0 0.0
    %100 = vmatprep.subr.mxu0 0.0
    %101 = vmatpush1.msra.mxu0 0.0
    %102 = vmatprep.subr.mxu0 0.0
    %103 = vmatpush1.msra.mxu0 0.0
    %104 = vmatprep.subr.mxu0 0.0
    %105 = vmatpush1.msra.mxu0 0.0
    %106 = vmatprep.subr.mxu0 0.0
    %107 = vmatpush1.msra.mxu0 0.0
    %108 = vmatprep.subr.mxu0 0.0
    %109 = vmatpush1.msra.mxu0 0.0
    %110 = vmatprep.subr.mxu0 0.0
    %111 = vmatpush1.msra.mxu0 0.0
    %112 = vmatprep.subr.mxu0 0.0
    %113 = vmatpush1.msra.mxu0 0.0
    %114 = vmatprep.subr.mxu0 0.0
    %115 = vmatpush1.msra.mxu0 0.0
    %116 = vmatprep.subr.mxu0 0.0
    %117 = vmatpush1.msra.mxu0 0.0
    %118 = vmatprep.subr.mxu0 0.0
    %119 = vmatpush1.msra.mxu0 0.0
    %120 = vmatprep.subr.mxu0 0.0
    %121 = vmatpush1.msra.mxu0 0.0
    %122 = vmatprep.subr.mxu0 0.0
    %123 = vmatpush1.msra.mxu0 0.0
    %124 = vmatprep.subr.mxu0 0.0
    %125 = vmatpush1.msra.mxu0 0.0
    %126 = vmatprep.subr.mxu0 0.0
    %127 = vmatpush1.msra.mxu0 0.0
    %128 = vmatprep.subr.mxu0 0.0
    %129 = vmatpush1.msra.mxu0 0.0
    %130 = vmatprep.subr.mxu0 0.0
    %131 = vmatpush1.msra.mxu0 0.0
    %132 = vmatprep.subr.mxu0 0.0
    %133 = vmatpush1.msra.mxu0 0.0
    %134 = vmatprep.subr.mxu0 0.0
    %135 = vmatpush1.msra.mxu0 0.0
    %136 = vmatprep.subr.mxu0 0.0
    %137 = vmatpush1.msra.mxu0 0.0
    %138 = vmatprep.subr.mxu0 0.0
    %139 = vmatpush1.msra.mxu0 0.0
    %140 = vmatprep.subr.mxu0 0.0
    %141 = vmatpush1.msra.mxu0 0.0
    %142 = vmatprep.subr.mxu0 0.0
    %143 = vmatpush1.msra.mxu0 0.0
    %144 = vmatprep.mubr.f32.mxu0 0.0
    %v145 = vand.u32 %v76, 4294901760
    %v146 = vsub.f32 %v76, %v145
    %v147 = vand.u32 %v146, 4294901760
    %v148 = vsub.f32 %v146, %v147
    %v149 = vand.u32 %v148, 4294901760
    %150 = vmatmul.mubr.f32.gmra.mrb[0].mxu0 %v149
    %v151 = vpop.f32.mrb[0].mxu0
    %v152 = vadd.f32 0.0, %v151
    %v153 = vpop.f32.mrb[0].mxu0
    %154 = vdwg.mxu0
    %155 = vmatprep.subr.mxu0 0.0
    %v156 = vand.u32 %v72, 4294901760
    %v157 = vsub.f32 %v72, %v156
    %v158 = vand.u32 %v157, 4294901760
    %v159 = vsub.f32 %v157, %v158
    %v160 = vand.u32 %v159, 4294901760
    %161 = vmatpush1.msra.mxu0 %v160
    %162 = vmatprep.subr.mxu0 0.0
    %v163 = vand.u32 %v73, 4294901760
    %v164 = vsub.f32 %v73, %v163
    %v165 = vand.u32 %v164, 4294901760
    %v166 = vsub.f32 %v164, %v165
    %v167 = vand.u32 %v166, 4294901760
    %168 = vmatpush1.msra.mxu0 %v167
    %169 = vmatprep.subr.mxu0 0.0
    %170 = vmatpush1.msra.mxu0 0.0
    %171 = vmatprep.subr.mxu0 0.0
    %172 = vmatpush1.msra.mxu0 0.0
    %173 = vmatprep.subr.mxu0 0.0
    %174 = vmatpush1.msra.mxu0 0.0
    %175 = vmatprep.subr.mxu0 0.0
    %176 = vmatpush1.msra.mxu0 0.0
    %177 = vmatprep.subr.mxu0 0.0
    %178 = vmatpush1.msra.mxu0 0.0
    %179 = vmatprep.subr.mxu0 0.0
    %180 = vmatpush1.msra.mxu0 0.0
    %181 = vmatprep.subr.mxu0 0.0
    %182 = vmatpush1.msra.mxu0 0.0
    %183 = vmatprep.subr.mxu0 0.0
    %184 = vmatpush1.msra.mxu0 0.0
    %185 = vmatprep.subr.mxu0 0.0
    %186 = vmatpush1.msra.mxu0 0.0
    %187 = vmatprep.subr.mxu0 0.0
    %188 = vmatpush1.msra.mxu0 0.0
    %189 = vmatprep.subr.mxu0 0.0
    %190 = vmatpush1.msra.mxu0 0.0
    %191 = vmatprep.subr.mxu0 0.0
    %192 = vmatpush1.msra.mxu0 0.0
    %193 = vmatprep.subr.mxu0 0.0
    %194 = vmatpush1.msra.mxu0 0.0
    %195 = vmatprep.subr.mxu0 0.0
    %196 = vmatpush1.msra.mxu0 0.0
    %197 = vmatprep.subr.mxu0 0.0
    %198 = vmatpush1.msra.mxu0 0.0
    %199 = vmatprep.subr.mxu0 0.0
    %200 = vmatpush1.msra.mxu0 0.0
    %201 = vmatprep.subr.mxu0 0.0
    %202 = vmatpush1.msra.mxu0 0.0
    %203 = vmatprep.subr.mxu0 0.0
    %204 = vmatpush1.msra.mxu0 0.0
    %205 = vmatprep.subr.mxu0 0.0
    %206 = vmatpush1.msra.mxu0 0.0
    %207 = vmatprep.subr.mxu0 0.0
    %208 = vmatpush1.msra.mxu0 0.0
    %209 = vmatprep.subr.mxu0 0.0
    %210 = vmatpush1.msra.mxu0 0.0
    %211 = vmatprep.subr.mxu0 0.0
    %212 = vmatpush1.msra.mxu0 0.0
    %213 = vmatprep.subr.mxu0 0.0
    %214 = vmatpush1.msra.mxu0 0.0
    %215 = vmatprep.subr.mxu0 0.0
    %216 = vmatpush1.msra.mxu0 0.0
    %217 = vmatprep.subr.mxu0 0.0
    %218 = vmatpush1.msra.mxu0 0.0
    %219 = vmatprep.subr.mxu0 0.0
    %220 = vmatpush1.msra.mxu0 0.0
    %221 = vmatprep.subr.mxu0 0.0
    %222 = vmatpush1.msra.mxu0 0.0
    %223 = vmatprep.subr.mxu0 0.0
    %224 = vmatpush1.msra.mxu0 0.0
    %225 = vmatprep.subr.mxu0 0.0
    %226 = vmatpush1.msra.mxu0 0.0
    %227 = vmatprep.subr.mxu0 0.0
    %228 = vmatpush1.msra.mxu0 0.0
    %229 = vmatprep.mubr.f32.mxu0 0.0
    %v230 = vand.u32 %v76, 4294901760
    %231 = vmatmul.mubr.f32.gmra.mrb[0].mxu0 %v230
    %v232 = vpop.f32.mrb[0].mxu0
    %v233 = vadd.f32 %v152, %v232
    %v234 = vpop.f32.mrb[0].mxu0
    %235 = vdwg.mxu0
    %236 = vmatprep.subr.mxu0 0.0
    %v237 = vand.u32 %v72, 4294901760
    %v238 = vsub.f32 %v72, %v237
    %239 = vmatpush1.msra.mxu0 %v238
    %240 = vmatprep.subr.mxu0 0.0
    %v241 = vand.u32 %v73, 4294901760
    %v242 = vsub.f32 %v73, %v241
    %243 = vmatpush1.msra.mxu0 %v242
    %244 = vmatprep.subr.mxu0 0.0
    %245 = vmatpush1.msra.mxu0 0.0
    %246 = vmatprep.subr.mxu0 0.0
    %247 = vmatpush1.msra.mxu0 0.0
    %248 = vmatprep.subr.mxu0 0.0
    %249 = vmatpush1.msra.mxu0 0.0
    %250 = vmatprep.subr.mxu0 0.0
    %251 = vmatpush1.msra.mxu0 0.0
    %252 = vmatprep.subr.mxu0 0.0
    %253 = vmatpush1.msra.mxu0 0.0
    %254 = vmatprep.subr.mxu0 0.0
    %255 = vmatpush1.msra.mxu0 0.0
    %256 = vmatprep.subr.mxu0 0.0
    %257 = vmatpush1.msra.mxu0 0.0
    %258 = vmatprep.subr.mxu0 0.0
    %259 = vmatpush1.msra.mxu0 0.0
    %260 = vmatprep.subr.mxu0 0.0
    %261 = vmatpush1.msra.mxu0 0.0
    %262 = vmatprep.subr.mxu0 0.0
    %263 = vmatpush1.msra.mxu0 0.0
    %264 = vmatprep.subr.mxu0 0.0
    %265 = vmatpush1.msra.mxu0 0.0
    %266 = vmatprep.subr.mxu0 0.0
    %267 = vmatpush1.msra.mxu0 0.0
    %268 = vmatprep.subr.mxu0 0.0
    %269 = vmatpush1.msra.mxu0 0.0
    %270 = vmatprep.subr.mxu0 0.0
    %271 = vmatpush1.msra.mxu0 0.0
    %272 = vmatprep.subr.mxu0 0.0
    %273 = vmatpush1.msra.mxu0 0.0
    %274 = vmatprep.subr.mxu0 0.0
    %275 = vmatpush1.msra.mxu0 0.0
    %276 = vmatprep.subr.mxu0 0.0
    %277 = vmatpush1.msra.mxu0 0.0
    %278 = vmatprep.subr.mxu0 0.0
    %279 = vmatpush1.msra.mxu0 0.0
    %280 = vmatprep.subr.mxu0 0.0
    %281 = vmatpush1.msra.mxu0 0.0
    %282 = vmatprep.subr.mxu0 0.0
    %283 = vmatpush1.msra.mxu0 0.0
    %284 = vmatprep.subr.mxu0 0.0
    %285 = vmatpush1.msra.mxu0 0.0
    %286 = vmatprep.subr.mxu0 0.0
    %287 = vmatpush1.msra.mxu0 0.0
    %288 = vmatprep.subr.mxu0 0.0
    %289 = vmatpush1.msra.mxu0 0.0
    %290 = vmatprep.subr.mxu0 0.0
    %291 = vmatpush1.msra.mxu0 0.0
    %292 = vmatprep.subr.mxu0 0.0
    %293 = vmatpush1.msra.mxu0 0.0
    %294 = vmatprep.subr.mxu0 0.0
    %295 = vmatpush1.msra.mxu0 0.0
    %296 = vmatprep.subr.mxu0 0.0
    %297 = vmatpush1.msra.mxu0 0.0
    %298 = vmatprep.subr.mxu0 0.0
    %299 = vmatpush1.msra.mxu0 0.0
    %300 = vmatprep.subr.mxu0 0.0
    %301 = vmatpush1.msra.mxu0 0.0
    %302 = vmatprep.subr.mxu0 0.0
    %303 = vmatpush1.msra.mxu0 0.0
    %304 = vmatprep.mubr.f32.mxu0 0.0
    %v305 = vand.u32 %v76, 4294901760
    %v306 = vsub.f32 %v76, %v305
    %307 = vmatmul.mubr.f32.gmra.mrb[0].mxu0 %v306
    %v308 = vpop.f32.mrb[0].mxu0
    %v309 = vadd.f32 %v233, %v308
    %v310 = vpop.f32.mrb[0].mxu0
    %311 = vdwg.mxu0
    %312 = vmatprep.subr.mxu0 0.0
    %v313 = vand.u32 %v72, 4294901760
    %314 = vmatpush1.msra.mxu0 %v313
    %315 = vmatprep.subr.mxu0 0.0
    %v316 = vand.u32 %v73, 4294901760
    %317 = vmatpush1.msra.mxu0 %v316
    %318 = vmatprep.subr.mxu0 0.0
    %319 = vmatpush1.msra.mxu0 0.0
    %320 = vmatprep.subr.mxu0 0.0
    %321 = vmatpush1.msra.mxu0 0.0
    %322 = vmatprep.subr.mxu0 0.0
    %323 = vmatpush1.msra.mxu0 0.0
    %324 = vmatprep.subr.mxu0 0.0
    %325 = vmatpush1.msra.mxu0 0.0
    %326 = vmatprep.subr.mxu0 0.0
    %327 = vmatpush1.msra.mxu0 0.0
    %328 = vmatprep.subr.mxu0 0.0
    %329 = vmatpush1.msra.mxu0 0.0
    %330 = vmatprep.subr.mxu0 0.0
    %331 = vmatpush1.msra.mxu0 0.0
    %332 = vmatprep.subr.mxu0 0.0
    %333 = vmatpush1.msra.mxu0 0.0
    %334 = vmatprep.subr.mxu0 0.0
    %335 = vmatpush1.msra.mxu0 0.0
    %336 = vmatprep.subr.mxu0 0.0
    %337 = vmatpush1.msra.mxu0 0.0
    %338 = vmatprep.subr.mxu0 0.0
    %339 = vmatpush1.msra.mxu0 0.0
    %340 = vmatprep.subr.mxu0 0.0
    %341 = vmatpush1.msra.mxu0 0.0
    %342 = vmatprep.subr.mxu0 0.0
    %343 = vmatpush1.msra.mxu0 0.0
    %344 = vmatprep.subr.mxu0 0.0
    %345 = vmatpush1.msra.mxu0 0.0
    %346 = vmatprep.subr.mxu0 0.0
    %347 = vmatpush1.msra.mxu0 0.0
    %348 = vmatprep.subr.mxu0 0.0
    %349 = vmatpush1.msra.mxu0 0.0
    %350 = vmatprep.subr.mxu0 0.0
    %351 = vmatpush1.msra.mxu0 0.0
    %352 = vmatprep.subr.mxu0 0.0
    %353 = vmatpush1.msra.mxu0 0.0
    %354 = vmatprep.subr.mxu0 0.0
    %355 = vmatpush1.msra.mxu0 0.0
    %356 = vmatprep.subr.mxu0 0.0
    %357 = vmatpush1.msra.mxu0 0.0
    %358 = vmatprep.subr.mxu0 0.0
    %359 = vmatpush1.msra.mxu0 0.0
    %360 = vmatprep.subr.mxu0 0.0
    %361 = vmatpush1.msra.mxu0 0.0
    %362 = vmatprep.subr.mxu0 0.0
    %363 = vmatpush1.msra.mxu0 0.0
    %364 = vmatprep.subr.mxu0 0.0
    %365 = vmatpush1.msra.mxu0 0.0
    %366 = vmatprep.subr.mxu0 0.0
    %367 = vmatpush1.msra.mxu0 0.0
    %368 = vmatprep.subr.mxu0 0.0
    %369 = vmatpush1.msra.mxu0 0.0
    %370 = vmatprep.subr.mxu0 0.0
    %371 = vmatpush1.msra.mxu0 0.0
    %372 = vmatprep.subr.mxu0 0.0
    %373 = vmatpush1.msra.mxu0 0.0
    %374 = vmatprep.subr.mxu0 0.0
    %375 = vmatpush1.msra.mxu0 0.0
    %376 = vmatprep.subr.mxu0 0.0
    %377 = vmatpush1.msra.mxu0 0.0
    %378 = vmatprep.mubr.f32.mxu0 0.0
    %v379 = vand.u32 %v76, 4294901760
    %v380 = vsub.f32 %v76, %v379
    %v381 = vand.u32 %v380, 4294901760
    %382 = vmatmul.mubr.f32.gmra.mrb[0].mxu0 %v381
    %v383 = vpop.f32.mrb[0].mxu0
    %v384 = vadd.f32 %v309, %v383
    %v385 = vpop.f32.mrb[0].mxu0
    %386 = vdwg.mxu0
    %387 = vmatprep.subr.mxu0 0.0
    %v388 = vand.u32 %v72, 4294901760
    %v389 = vsub.f32 %v72, %v388
    %v390 = vand.u32 %v389, 4294901760
    %391 = vmatpush1.msra.mxu0 %v390
    %392 = vmatprep.subr.mxu0 0.0
    %v393 = vand.u32 %v73, 4294901760
    %v394 = vsub.f32 %v73, %v393
    %v395 = vand.u32 %v394, 4294901760
    %396 = vmatpush1.msra.mxu0 %v395
    %397 = vmatprep.subr.mxu0 0.0
    %398 = vmatpush1.msra.mxu0 0.0
    %399 = vmatprep.subr.mxu0 0.0
    %400 = vmatpush1.msra.mxu0 0.0
    %401 = vmatprep.subr.mxu0 0.0
    %402 = vmatpush1.msra.mxu0 0.0
    %403 = vmatprep.subr.mxu0 0.0
    %404 = vmatpush1.msra.mxu0 0.0
    %405 = vmatprep.subr.mxu0 0.0
    %406 = vmatpush1.msra.mxu0 0.0
    %407 = vmatprep.subr.mxu0 0.0
    %408 = vmatpush1.msra.mxu0 0.0
    %409 = vmatprep.subr.mxu0 0.0
    %410 = vmatpush1.msra.mxu0 0.0
    %411 = vmatprep.subr.mxu0 0.0
    %412 = vmatpush1.msra.mxu0 0.0
    %413 = vmatprep.subr.mxu0 0.0
    %414 = vmatpush1.msra.mxu0 0.0
    %415 = vmatprep.subr.mxu0 0.0
    %416 = vmatpush1.msra.mxu0 0.0
    %417 = vmatprep.subr.mxu0 0.0
    %418 = vmatpush1.msra.mxu0 0.0
    %419 = vmatprep.subr.mxu0 0.0
    %420 = vmatpush1.msra.mxu0 0.0
    %421 = vmatprep.subr.mxu0 0.0
    %422 = vmatpush1.msra.mxu0 0.0
    %423 = vmatprep.subr.mxu0 0.0
    %424 = vmatpush1.msra.mxu0 0.0
    %425 = vmatprep.subr.mxu0 0.0
    %426 = vmatpush1.msra.mxu0 0.0
    %427 = vmatprep.subr.mxu0 0.0
    %428 = vmatpush1.msra.mxu0 0.0
    %429 = vmatprep.subr.mxu0 0.0
    %430 = vmatpush1.msra.mxu0 0.0
    %431 = vmatprep.subr.mxu0 0.0
    %432 = vmatpush1.msra.mxu0 0.0
    %433 = vmatprep.subr.mxu0 0.0
    %434 = vmatpush1.msra.mxu0 0.0
    %435 = vmatprep.subr.mxu0 0.0
    %436 = vmatpush1.msra.mxu0 0.0
    %437 = vmatprep.subr.mxu0 0.0
    %438 = vmatpush1.msra.mxu0 0.0
    %439 = vmatprep.subr.mxu0 0.0
    %440 = vmatpush1.msra.mxu0 0.0
    %441 = vmatprep.subr.mxu0 0.0
    %442 = vmatpush1.msra.mxu0 0.0
    %443 = vmatprep.subr.mxu0 0.0
    %444 = vmatpush1.msra.mxu0 0.0
    %445 = vmatprep.subr.mxu0 0.0
    %446 = vmatpush1.msra.mxu0 0.0
    %447 = vmatprep.subr.mxu0 0.0
    %448 = vmatpush1.msra.mxu0 0.0
    %449 = vmatprep.subr.mxu0 0.0
    %450 = vmatpush1.msra.mxu0 0.0
    %451 = vmatprep.subr.mxu0 0.0
    %452 = vmatpush1.msra.mxu0 0.0
    %453 = vmatprep.subr.mxu0 0.0
    %454 = vmatpush1.msra.mxu0 0.0
    %455 = vmatprep.subr.mxu0 0.0
    %456 = vmatpush1.msra.mxu0 0.0
    %457 = vmatprep.mubr.f32.mxu0 0.0
    %v458 = vand.u32 %v76, 4294901760
    %459 = vmatmul.mubr.f32.gmra.mrb[0].mxu0 %v458
    %v460 = vpop.f32.mrb[0].mxu0
    %v461 = vadd.f32 %v384, %v460
    %v462 = vpop.f32.mrb[0].mxu0
    %463 = vdwg.mxu0
    %464 = vmatprep.subr.mxu0 0.0
    %v465 = vand.u32 %v72, 4294901760
    %466 = vmatpush1.msra.mxu0 %v465
    %467 = vmatprep.subr.mxu0 0.0
    %v468 = vand.u32 %v73, 4294901760
    %469 = vmatpush1.msra.mxu0 %v468
    %470 = vmatprep.subr.mxu0 0.0
    %471 = vmatpush1.msra.mxu0 0.0
    %472 = vmatprep.subr.mxu0 0.0
    %473 = vmatpush1.msra.mxu0 0.0
    %474 = vmatprep.subr.mxu0 0.0
    %475 = vmatpush1.msra.mxu0 0.0
    %476 = vmatprep.subr.mxu0 0.0
    %477 = vmatpush1.msra.mxu0 0.0
    %478 = vmatprep.subr.mxu0 0.0
    %479 = vmatpush1.msra.mxu0 0.0
    %480 = vmatprep.subr.mxu0 0.0
    %481 = vmatpush1.msra.mxu0 0.0
    %482 = vmatprep.subr.mxu0 0.0
    %483 = vmatpush1.msra.mxu0 0.0
    %484 = vmatprep.subr.mxu0 0.0
    %485 = vmatpush1.msra.mxu0 0.0
    %486 = vmatprep.subr.mxu0 0.0
    %487 = vmatpush1.msra.mxu0 0.0
    %488 = vmatprep.subr.mxu0 0.0
    %489 = vmatpush1.msra.mxu0 0.0
    %490 = vmatprep.subr.mxu0 0.0
    %491 = vmatpush1.msra.mxu0 0.0
    %492 = vmatprep.subr.mxu0 0.0
    %493 = vmatpush1.msra.mxu0 0.0
    %494 = vmatprep.subr.mxu0 0.0
    %495 = vmatpush1.msra.mxu0 0.0
    %496 = vmatprep.subr.mxu0 0.0
    %497 = vmatpush1.msra.mxu0 0.0
    %498 = vmatprep.subr.mxu0 0.0
    %499 = vmatpush1.msra.mxu0 0.0
    %500 = vmatprep.subr.mxu0 0.0
    %501 = vmatpush1.msra.mxu0 0.0
    %502 = vmatprep.subr.mxu0 0.0
    %503 = vmatpush1.msra.mxu0 0.0
    %504 = vmatprep.subr.mxu0 0.0
    %505 = vmatpush1.msra.mxu0 0.0
    %506 = vmatprep.subr.mxu0 0.0
    %507 = vmatpush1.msra.mxu0 0.0
    %508 = vmatprep.subr.mxu0 0.0
    %509 = vmatpush1.msra.mxu0 0.0
    %510 = vmatprep.subr.mxu0 0.0
    %511 = vmatpush1.msra.mxu0 0.0
    %512 = vmatprep.subr.mxu0 0.0
    %513 = vmatpush1.msra.mxu0 0.0
    %514 = vmatprep.subr.mxu0 0.0
    %515 = vmatpush1.msra.mxu0 0.0
    %516 = vmatprep.subr.mxu0 0.0
    %517 = vmatpush1.msra.mxu0 0.0
    %518 = vmatprep.subr.mxu0 0.0
    %519 = vmatpush1.msra.mxu0 0.0
    %520 = vmatprep.subr.mxu0 0.0
    %521 = vmatpush1.msra.mxu0 0.0
    %522 = vmatprep.subr.mxu0 0.0
    %523 = vmatpush1.msra.mxu0 0.0
    %524 = vmatprep.subr.mxu0 0.0
    %525 = vmatpush1.msra.mxu0 0.0
    %526 = vmatprep.subr.mxu0 0.0
    %527 = vmatpush1.msra.mxu0 0.0
    %528 = vmatprep.subr.mxu0 0.0
    %529 = vmatpush1.msra.mxu0 0.0
    %530 = vmatprep.mubr.f32.mxu0 0.0
    %v531 = vand.u32 %v76, 4294901760
    %532 = vmatmul.mubr.f32.gmra.mrb[0].mxu0 %v531
    %v533 = vpop.f32.mrb[0].mxu0
    %v534 = vadd.f32 %v461, %v533
    %v535 = vpop.f32.mrb[0].mxu0
    %536 = vdwg.mxu0
    %v537 = vmul.f32 %v70, %v534
    %538 = vst [vmem:[#allocation7] sm:$0x3] %v537
    // Predicated region
    $region34: #{tpu_custom_call.1} parent=1 // pred_check
      _
    $region35: #{tpu_custom_call.1} parent=1 // pred_check_branch
      %540 = sbr.rel (0) target = $region37
    $region36: #{tpu_custom_call.1} parent=1 // pred_region
      %s542 = ssub.s32 32, 32
      %543 = vsyncadd [#allocation4], %s542
      %s545 = sshll.u32 [#allocation7], 4
      %s546 = int_to_ptr.vmem [resolvable:$true] %s545
      %548 = dma.vmem_to_hbm [thread:$0]  %s546, 32, %s6, [#allocation4]
    $region37: #{tpu_custom_call.1} parent=1 // pred_fallthru
      _
    // Predicated region
    $region38: #{tpu_custom_call.1} parent=1 // pred_check
      _
    $region39: #{tpu_custom_call.1} parent=1 // pred_check_branch
      %550 = sbr.rel (0) target = $region41
    $region40: #{tpu_custom_call.1} parent=1 // pred_region
      %551 = dma.done [#allocation4], 32
    $region41: #{tpu_custom_call.1} parent=1 // pred_fallthru
      _
    %552 = vsyncpa [#allocation3], 1
    %553 = vsyncpa [#allocation6], 1
    %554 = vsyncpa [#allocation4], 1

</llo_original>
